<compile_context>
chip_gen: v6e
topology: v6e:2x2x1
jax: 0.10.0
libtpu: 0.0.40
codegen_flags: <defaults>
</compile_context>

<pallas_src>
import jax
import jax.numpy as jnp
from jax.experimental import pallas as pl
from jax.experimental.pallas import tpu as pltpu

SUBLANE = 8


def _round_up(n, m):
    return ((n + m - 1) // m) * m


def autoencoder_kernel(x_ref, w1_ref, b1_ref, w2_ref, b2_ref, enc_ref, dec_ref):
    """Both matmuls + activations fused; one batch tile per grid step."""
    x = x_ref[...]

    # Encoder: Linear + ReLU (MXU matmul, explicit f32 accumulation).
    h = jnp.dot(x, w1_ref[...], preferred_element_type=jnp.float32)
    h = h + b1_ref[...]                      # b1 is already f32, broadcast over rows
    enc = jnp.maximum(h, 0.0)
    enc_ref[...] = enc.astype(enc_ref.dtype)

    # Decoder: Linear + Sigmoid. Reuse in-register f32 `enc`; never re-read enc_ref.
    d = jnp.dot(enc, w2_ref[...], preferred_element_type=jnp.float32)
    d = d + b2_ref[...]
    dec_ref[...] = jax.nn.sigmoid(d).astype(dec_ref.dtype)


def basic_sparse_autoencoder(x, w_enc, b_enc, w_dec, b_dec, *, tm_max=2048):
    """x: [B, input_dim]; w_enc: [input_dim, hidden]; w_dec: [hidden, input_dim];
    b_enc: [hidden]; b_dec: [input_dim]. Returns (encoded [B, hidden], decoded [B, input_dim])."""
    B, input_dim = x.shape
    hidden_dim = w_enc.shape[1]
    assert w_enc.shape == (input_dim, hidden_dim)
    assert w_dec.shape == (hidden_dim, input_dim)
    assert b_enc.shape == (hidden_dim,)
    assert b_dec.shape == (input_dim,)

    # Batch tiling: aim for >= 2 tiles (so v7x's two TensorCores both engage) while
    # keeping tm a sublane multiple. No batch padding — partial last tile is masked.
    if B <= SUBLANE:
        tm = B  # block dim == full array dim is always a legal block shape
    else:
        tm = min(tm_max, _round_up(pl.cdiv(B, 2), SUBLANE))
    grid = (pl.cdiv(B, tm),)

    # Biases as (1, N) f32 rows; cast once here instead of per tile in the kernel.
    b1 = b_enc.reshape(1, hidden_dim).astype(jnp.float32)
    b2 = b_dec.reshape(1, input_dim).astype(jnp.float32)

    out_dtype = x.dtype

    def _bytes(arr):
        return arr.size * jnp.dtype(arr.dtype).itemsize

    out_isz = jnp.dtype(out_dtype).itemsize
    cost = pl.CostEstimate(
        flops=2 * B * (input_dim * hidden_dim + hidden_dim * input_dim),
        transcendentals=2 * B * input_dim,  # sigmoid = exp + reciprocal
        bytes_accessed=(_bytes(x) + _bytes(w_enc) + _bytes(b1) + _bytes(w_dec)
                        + _bytes(b2)
                        + B * hidden_dim * out_isz + B * input_dim * out_isz),
    )

    encoded, decoded = pl.pallas_call(
        autoencoder_kernel,
        out_shape=(
            jax.ShapeDtypeStruct((B, hidden_dim), out_dtype),
            jax.ShapeDtypeStruct((B, input_dim), out_dtype),
        ),
        grid=grid,
        in_specs=[
            pl.BlockSpec((tm, input_dim), lambda i: (i, 0)),         # x streams over batch
            pl.BlockSpec((input_dim, hidden_dim), lambda i: (0, 0)), # weights VMEM-resident
            pl.BlockSpec((1, hidden_dim), lambda i: (0, 0)),
            pl.BlockSpec((hidden_dim, input_dim), lambda i: (0, 0)),
            pl.BlockSpec((1, input_dim), lambda i: (0, 0)),
        ],
        out_specs=(
            pl.BlockSpec((tm, hidden_dim), lambda i: (i, 0)),        # native 20-lane enc
            pl.BlockSpec((tm, input_dim), lambda i: (i, 0)),
        ),
        compiler_params=pltpu.CompilerParams(
            dimension_semantics=("parallel",),      # shard batch tiles across TCs on v7x
            vmem_limit_bytes=32 * 1024 * 1024,      # headroom for tm=2048 on all gens
        ),
        cost_estimate=cost,
    )(x, w_enc, b1, w_dec, b2)

    return encoded, decoded


def init_params(key, input_dim, hidden_dim, dtype=jnp.float32):
    """Deterministic init mimicking nn.Linear's U(-1/sqrt(fan_in), 1/sqrt(fan_in)).
    Weights stored pre-transposed as [in, out]; biases 1-D like PyTorch."""
    k1, k2, k3, k4 = jax.random.split(key, 4)
    lim_enc = 1.0 / jnp.sqrt(input_dim)
    lim_dec = 1.0 / jnp.sqrt(hidden_dim)
    w_enc = jax.random.uniform(k1, (input_dim, hidden_dim), dtype, -lim_enc, lim_enc)
    b_enc = jax.random.uniform(k2, (hidden_dim,), dtype, -lim_enc, lim_enc)
    w_dec = jax.random.uniform(k3, (hidden_dim, input_dim), dtype, -lim_dec, lim_dec)
    b_dec = jax.random.uniform(k4, (input_dim,), dtype, -lim_dec, lim_dec)
    return w_enc, b_enc, w_dec, b_dec


if __name__ == "__main__":
    input_dim = 100
    hidden_dim = 20
    batch = 16  # > SUBLANE so the demo exercises a 2-tile grid (one per TC on v7x)

    key = jax.random.PRNGKey(0)
    k_x, k_p = jax.random.split(key)
    x = jax.random.normal(k_x, (batch, input_dim), dtype=jnp.float32)
    w_enc, b_enc, w_dec, b_dec = init_params(k_p, input_dim, hidden_dim)

    encoded, decoded = basic_sparse_autoencoder(x, w_enc, b_enc, w_dec, b_dec)
    jax.block_until_ready((encoded, decoded))

    # Pure-JAX reference of the same math.
    enc_ref = jnp.maximum(x @ w_enc + b_enc[None, :], 0.0)
    dec_ref = jax.nn.sigmoid(enc_ref @ w_dec + b_dec[None, :])
    assert encoded.shape == (batch, hidden_dim)
    assert decoded.shape == (batch, input_dim)
    assert jnp.allclose(encoded, enc_ref, rtol=1e-5, atol=1e-5)
    assert jnp.allclose(decoded, dec_ref, rtol=1e-5, atol=1e-5)

    print("KERNEL_OK")
</pallas_src>

<mosaic_0001>
module attributes {stable_mosaic.version = 11 : i64} {
  func.func @autoencoder_kernel(%arg0: i32, %arg1: memref<8x100xf32, #tpu.memory_space<vmem>>, %arg2: memref<100x20xf32, #tpu.memory_space<vmem>>, %arg3: memref<1x20xf32, #tpu.memory_space<vmem>>, %arg4: memref<20x100xf32, #tpu.memory_space<vmem>>, %arg5: memref<1x100xf32, #tpu.memory_space<vmem>>, %arg6: memref<8x20xf32, #tpu.memory_space<vmem>>, %arg7: memref<8x100xf32, #tpu.memory_space<vmem>>) attributes {dimension_semantics = [#tpu.dimension_semantics<parallel>], iteration_bounds = array<i64: 2>, scalar_prefetch = 0 : i64, scratch_operands = 0 : i64, tpu.core_type = #tpu.core_type<tc>, window_params = [{transform_indices = @transform_0, window_bounds = array<i64: 8, 100>}, {pipeline_mode = #tpu.pipeline_mode<synchronous>, transform_indices = @transform_1, window_bounds = array<i64: 100, 20>}, {pipeline_mode = #tpu.pipeline_mode<synchronous>, transform_indices = @transform_2, window_bounds = array<i64: 1, 20>}, {pipeline_mode = #tpu.pipeline_mode<synchronous>, transform_indices = @transform_3, window_bounds = array<i64: 20, 100>}, {pipeline_mode = #tpu.pipeline_mode<synchronous>, transform_indices = @transform_4, window_bounds = array<i64: 1, 100>}, {transform_indices = @transform_5, window_bounds = array<i64: 8, 20>}, {transform_indices = @transform_6, window_bounds = array<i64: 8, 100>}]} {
    %c0 = arith.constant 0 : index
    %c0_0 = arith.constant 0 : index
    %0 = vector.load %arg1[%c0, %c0_0] : memref<8x100xf32, #tpu.memory_space<vmem>>, vector<8x100xf32>
    %c0_1 = arith.constant 0 : index
    %c0_2 = arith.constant 0 : index
    %1 = vector.load %arg2[%c0_1, %c0_2] : memref<100x20xf32, #tpu.memory_space<vmem>>, vector<100x20xf32>
    %cst = arith.constant dense<0.000000e+00> : vector<8x20xf32>
    %2 = tpu.matmul %0, %1, %cst {dimension_numbers = #tpu.dot_dimension_numbers<[1], [0], [0], [1], [0, 0, 1, 1], [], []>} : vector<8x100xf32>, vector<100x20xf32>, vector<8x20xf32> -> vector<8x20xf32>
    %c0_3 = arith.constant 0 : index
    %c0_4 = arith.constant 0 : index
    %3 = vector.load %arg3[%c0_3, %c0_4] : memref<1x20xf32, #tpu.memory_space<vmem>>, vector<1x20xf32>
    %4 = vector.broadcast %3 : vector<1x20xf32> to vector<8x20xf32>
    %5 = arith.addf %2, %4 : vector<8x20xf32>
    %cst_5 = arith.constant 0.000000e+00 : f32
    %6 = vector.broadcast %cst_5 : f32 to vector<8x20xf32>
    %7 = arith.maximumf %5, %6 : vector<8x20xf32>
    %c0_6 = arith.constant 0 : index
    %c0_7 = arith.constant 0 : index
    %8 = vector.load %arg6[%c0_6, %c0_7] : memref<8x20xf32, #tpu.memory_space<vmem>>, vector<8x20xf32>
    tpu.vector_store %arg6[%c0_6, %c0_7], %7 {strides = array<i32>} : memref<8x20xf32, #tpu.memory_space<vmem>>, vector<8x20xf32>,
    %c0_8 = arith.constant 0 : index
    %c0_9 = arith.constant 0 : index
    %9 = vector.load %arg4[%c0_8, %c0_9] : memref<20x100xf32, #tpu.memory_space<vmem>>, vector<20x100xf32>
    %cst_10 = arith.constant dense<0.000000e+00> : vector<8x100xf32>
    %10 = tpu.matmul %7, %9, %cst_10 {dimension_numbers = #tpu.dot_dimension_numbers<[1], [0], [0], [1], [0, 0, 1, 1], [], []>} : vector<8x20xf32>, vector<20x100xf32>, vector<8x100xf32> -> vector<8x100xf32>
    %c0_11 = arith.constant 0 : index
    %c0_12 = arith.constant 0 : index
    %11 = vector.load %arg5[%c0_11, %c0_12] : memref<1x100xf32, #tpu.memory_space<vmem>>, vector<1x100xf32>
    %12 = vector.broadcast %11 : vector<1x100xf32> to vector<8x100xf32>
    %13 = arith.addf %10, %12 : vector<8x100xf32>
    %14 = arith.negf %13 : vector<8x100xf32>
    %15 = math.exp %14 : vector<8x100xf32>
    %cst_13 = arith.constant 1.000000e+00 : f32
    %16 = vector.broadcast %cst_13 : f32 to vector<8x100xf32>
    %17 = arith.addf %16, %15 : vector<8x100xf32>
    %18 = arith.divf %16, %17 : vector<8x100xf32>
    %c0_14 = arith.constant 0 : index
    %c0_15 = arith.constant 0 : index
    %19 = vector.load %arg7[%c0_14, %c0_15] : memref<8x100xf32, #tpu.memory_space<vmem>>, vector<8x100xf32>
    tpu.vector_store %arg7[%c0_14, %c0_15], %18 {strides = array<i32>} : memref<8x100xf32, #tpu.memory_space<vmem>>, vector<8x100xf32>,
    return
  }
  func.func @transform_0(%arg0: i32) -> (i32, i32) {
    %c0_i32 = arith.constant 0 : i32
    %c0_i32_0 = arith.constant 0 : i32
    return %arg0, %c0_i32 : i32, i32
  }
  func.func @transform_1(%arg0: i32) -> (i32, i32) {
    %c0_i32 = arith.constant 0 : i32
    %c0_i32_0 = arith.constant 0 : i32
    %c0_i32_1 = arith.constant 0 : i32
    return %c0_i32, %c0_i32_0 : i32, i32
  }
  func.func @transform_2(%arg0: i32) -> (i32, i32) {
    %c0_i32 = arith.constant 0 : i32
    %c0_i32_0 = arith.constant 0 : i32
    %c0_i32_1 = arith.constant 0 : i32
    return %c0_i32, %c0_i32_0 : i32, i32
  }
  func.func @transform_3(%arg0: i32) -> (i32, i32) {
    %c0_i32 = arith.constant 0 : i32
    %c0_i32_0 = arith.constant 0 : i32
    %c0_i32_1 = arith.constant 0 : i32
    return %c0_i32, %c0_i32_0 : i32, i32
  }
  func.func @transform_4(%arg0: i32) -> (i32, i32) {
    %c0_i32 = arith.constant 0 : i32
    %c0_i32_0 = arith.constant 0 : i32
    %c0_i32_1 = arith.constant 0 : i32
    return %c0_i32, %c0_i32_0 : i32, i32
  }
  func.func @transform_5(%arg0: i32) -> (i32, i32) {
    %c0_i32 = arith.constant 0 : i32
    %c0_i32_0 = arith.constant 0 : i32
    return %arg0, %c0_i32 : i32, i32
  }
  func.func @transform_6(%arg0: i32) -> (i32, i32) {
    %c0_i32 = arith.constant 0 : i32
    %c0_i32_0 = arith.constant 0 : i32
    return %arg0, %c0_i32 : i32, i32
  }
}

</mosaic_0001>

<llo_original>
// kernel: tpu_custom_call.1
$region0: #{tpu_custom_call.1}
  #allocation0 [shape = 'u32[]', space=smem, size = 0x4, offset = 0x4, fixed_abs, tag = 'smem constant byte address 0x4 - core index']
  #allocation1 [shape = 'u32[144,128]{1,0:T(1,128)}', space=vmem, size = 0x12000, scoped, tag = 'internal scratch']
  %s0 = inlined_call_operand.vmem [shape: f32[16,100], index: 0, kind: input, shape index: {}]
  %s1 = inlined_call_operand.vmem [shape: f32[100,20], index: 1, kind: input, shape index: {}]
  %s2 = inlined_call_operand.vmem [shape: f32[1,20], index: 2, kind: input, shape index: {}]
  %s3 = inlined_call_operand.vmem [shape: f32[20,100], index: 3, kind: input, shape index: {}]
  %s4 = inlined_call_operand.vmem [shape: f32[1,100], index: 4, kind: input, shape index: {}]
  %s5 = inlined_call_operand.hbm [shape: f32[16,20], index: 5, kind: output, shape index: {0}]
  %s6 = inlined_call_operand.hbm [shape: f32[16,100], index: 6, kind: output, shape index: {1}]
  %7 = xla_tuple %s5, %s6
  %s8 = sld [smem:[#allocation0]]
  $region61: #{tpu_custom_call.1} parent=0
    _
  %s10 = ssub.s32 1, %s8
  %s11 = scalar_select 0, %s10, %s8
  $region1: #{tpu_custom_call.1} parent=0
    #allocation2 [shape = 'u8[8192]{0}', space=vmem, size = 0x2000, scoped, tag = 'output window, operand 0']
    #allocation3 [shape = 's32[2]{0}', space=sflag, size = 0x8, scoped, tag = 'scoped memory for tpu_custom_call.1']
    #allocation4 [shape = 'u8[8192]{0}', space=vmem, size = 0x2000, scoped, tag = 'output window, operand 1']
    #allocation5 [shape = 's32[2]{0}', space=sflag, size = 0x8, scoped, tag = 'scoped memory for tpu_custom_call.1']
    %12 = vsyncpa [#allocation3], 0
    %s13 = scalar_lea.sflag [#allocation3], 1
    %14 = vsyncpa %s13, 0
    %15 = vsyncpa [#allocation5], 0
    %s16 = scalar_lea.sflag [#allocation5], 1
    %17 = vsyncpa %s16, 0
    loop: start=0, step=1, limit=4
    $region2: #{tpu_custom_call.1} parent=1 // loop_pre_header
      _
    $region3: #{tpu_custom_call.1} parent=1 // loop_header
      %s19 = sphi 0, %s23
      %p20 = scmp.ge.s32.totalorder %s19, 4
      %s29 = sphi 0, %s31
      %s32 = sphi 0, %s29
      %s33 = sphi 0, %s32
      %s49 = sphi 0, %s33
      %s53 = sphi 0, %s53
      %s55 = sphi 0, %s53
      %s56 = sphi 0, %s55
      %s70 = sphi 0, %s56
      %s74 = sphi 0, %s74
      %s76 = sphi 0, %s74
      %s77 = sphi 0, %s76
      %s91 = sphi 0, %s77
      %s95 = sphi 0, %s95
      %s97 = sphi 0, %s95
      %s98 = sphi 0, %s97
      %s112 = sphi 0, %s98
      %s116 = sphi 0, %s116
      %s118 = sphi 0, %s116
      %s119 = sphi 0, %s118
      %s133 = sphi 0, %s119
      %s139 = sphi 0, %s141
      %s142 = sphi 0, %s139
      %s143 = sphi 0, %s142
      %s159 = sphi 0, %s143
      %s165 = sphi 0, %s167
      %s168 = sphi 0, %s165
      %s169 = sphi 0, %s168
      %s185 = sphi 0, %s169
    $region4: #{tpu_custom_call.1} parent=1 // loop_header_branch
      %22 = sbr.rel (%p20) target = $region8
    $region5: #{tpu_custom_call.1} parent=1 // loop_body
      %s24 = ssub.s32 %s19, 1
      %s25 = ssub.s32 %s19, 2
      %s26 = sadd.s32 %s19, 1
      %s27 = ssub.s32 %s19, %s26
      %p28 = scmp.eq.s32.totalorder %s27, 0
      %s30 = sadd.s32 %s29, 1
      %s31 = scalar_select %p28, %s29, %s30
      %p34 = pneg %p28
      %p35 = scmp.eq.s32.totalorder %s19, 1
      %p36 = por %p34, %p35
      %p37 = scmp.ne.s32.totalorder %s29, %s32
      %p38 = scmp.eq.s32.totalorder %s19, 0
      %p39 = por %p37, %p38
      %p40 = scmp.ne.s32.totalorder %s29, %s32
      %p41 = scmp.eq.s32.totalorder %s24, 1
      %p42 = por %p40, %p41
      %p43 = scmp.ne.s32.totalorder %s32, %s33
      %p44 = scmp.eq.s32.totalorder %s24, 0
      %p45 = por %p43, %p44
      %p46 = scmp.ne.s32.totalorder %s32, %s33
      %p47 = scmp.eq.s32.totalorder %s25, 1
      %p48 = por %p46, %p47
      %p50 = scmp.ne.s32.totalorder %s33, %s49
      %p51 = scmp.eq.s32.totalorder %s25, 0
      %p52 = por %p50, %p51
      %s54 = sadd.s32 %s53, 1
      %p57 = scmp.eq.s32.totalorder %s19, 1
      %p58 = scmp.ne.s32.totalorder %s53, %s55
      %p59 = scmp.eq.s32.totalorder %s19, 0
      %p60 = por %p58, %p59
      %p61 = scmp.ne.s32.totalorder %s53, %s55
      %p62 = scmp.eq.s32.totalorder %s24, 1
      %p63 = por %p61, %p62
      %p64 = scmp.ne.s32.totalorder %s55, %s56
      %p65 = scmp.eq.s32.totalorder %s24, 0
      %p66 = por %p64, %p65
      %p67 = scmp.ne.s32.totalorder %s55, %s56
      %p68 = scmp.eq.s32.totalorder %s25, 1
      %p69 = por %p67, %p68
      %p71 = scmp.ne.s32.totalorder %s56, %s70
      %p72 = scmp.eq.s32.totalorder %s25, 0
      %p73 = por %p71, %p72
      %s75 = sadd.s32 %s74, 1
      %p78 = scmp.eq.s32.totalorder %s19, 1
      %p79 = scmp.ne.s32.totalorder %s74, %s76
      %p80 = scmp.eq.s32.totalorder %s19, 0
      %p81 = por %p79, %p80
      %p82 = scmp.ne.s32.totalorder %s74, %s76
      %p83 = scmp.eq.s32.totalorder %s24, 1
      %p84 = por %p82, %p83
      %p85 = scmp.ne.s32.totalorder %s76, %s77
      %p86 = scmp.eq.s32.totalorder %s24, 0
      %p87 = por %p85, %p86
      %p88 = scmp.ne.s32.totalorder %s76, %s77
      %p89 = scmp.eq.s32.totalorder %s25, 1
      %p90 = por %p88, %p89
      %p92 = scmp.ne.s32.totalorder %s77, %s91
      %p93 = scmp.eq.s32.totalorder %s25, 0
      %p94 = por %p92, %p93
      %s96 = sadd.s32 %s95, 1
      %p99 = scmp.eq.s32.totalorder %s19, 1
      %p100 = scmp.ne.s32.totalorder %s95, %s97
      %p101 = scmp.eq.s32.totalorder %s19, 0
      %p102 = por %p100, %p101
      %p103 = scmp.ne.s32.totalorder %s95, %s97
      %p104 = scmp.eq.s32.totalorder %s24, 1
      %p105 = por %p103, %p104
      %p106 = scmp.ne.s32.totalorder %s97, %s98
      %p107 = scmp.eq.s32.totalorder %s24, 0
      %p108 = por %p106, %p107
      %p109 = scmp.ne.s32.totalorder %s97, %s98
      %p110 = scmp.eq.s32.totalorder %s25, 1
      %p111 = por %p109, %p110
      %p113 = scmp.ne.s32.totalorder %s98, %s112
      %p114 = scmp.eq.s32.totalorder %s25, 0
      %p115 = por %p113, %p114
      %s117 = sadd.s32 %s116, 1
      %p120 = scmp.eq.s32.totalorder %s19, 1
      %p121 = scmp.ne.s32.totalorder %s116, %s118
      %p122 = scmp.eq.s32.totalorder %s19, 0
      %p123 = por %p121, %p122
      %p124 = scmp.ne.s32.totalorder %s116, %s118
      %p125 = scmp.eq.s32.totalorder %s24, 1
      %p126 = por %p124, %p125
      %p127 = scmp.ne.s32.totalorder %s118, %s119
      %p128 = scmp.eq.s32.totalorder %s24, 0
      %p129 = por %p127, %p128
      %p130 = scmp.ne.s32.totalorder %s118, %s119
      %p131 = scmp.eq.s32.totalorder %s25, 1
      %p132 = por %p130, %p131
      %p134 = scmp.ne.s32.totalorder %s119, %s133
      %p135 = scmp.eq.s32.totalorder %s25, 0
      %p136 = por %p134, %p135
      %s137 = ssub.s32 %s19, %s26
      %p138 = scmp.eq.s32.totalorder %s137, 0
      %s140 = sadd.s32 %s139, 1
      %s141 = scalar_select %p138, %s139, %s140
      %p144 = pneg %p138
      %p145 = scmp.eq.s32.totalorder %s19, 1
      %p146 = por %p144, %p145
      %p147 = scmp.ne.s32.totalorder %s139, %s142
      %p148 = scmp.eq.s32.totalorder %s19, 0
      %p149 = por %p147, %p148
      %p150 = scmp.ne.s32.totalorder %s139, %s142
      %p151 = scmp.eq.s32.totalorder %s24, 1
      %p152 = por %p150, %p151
      %p153 = scmp.ne.s32.totalorder %s142, %s143
      %p154 = scmp.eq.s32.totalorder %s24, 0
      %p155 = por %p153, %p154
      %p156 = scmp.ne.s32.totalorder %s142, %s143
      %p157 = scmp.eq.s32.totalorder %s25, 1
      %p158 = por %p156, %p157
      %p160 = scmp.ne.s32.totalorder %s143, %s159
      %p161 = scmp.eq.s32.totalorder %s25, 0
      %p162 = por %p160, %p161
      %s163 = ssub.s32 %s19, %s26
      %p164 = scmp.eq.s32.totalorder %s163, 0
      %s166 = sadd.s32 %s165, 1
      %s167 = scalar_select %p164, %s165, %s166
      %p170 = pneg %p164
      %p171 = scmp.eq.s32.totalorder %s19, 1
      %p172 = por %p170, %p171
      %p173 = scmp.ne.s32.totalorder %s165, %s168
      %p174 = scmp.eq.s32.totalorder %s19, 0
      %p175 = por %p173, %p174
      %p176 = scmp.ne.s32.totalorder %s165, %s168
      %p177 = scmp.eq.s32.totalorder %s24, 1
      %p178 = por %p176, %p177
      %p179 = scmp.ne.s32.totalorder %s168, %s169
      %p180 = scmp.eq.s32.totalorder %s24, 0
      %p181 = por %p179, %p180
      %p182 = scmp.ne.s32.totalorder %s168, %s169
      %p183 = scmp.eq.s32.totalorder %s25, 1
      %p184 = por %p182, %p183
      %p186 = scmp.ne.s32.totalorder %s169, %s185
      %p187 = scmp.eq.s32.totalorder %s25, 0
      %p188 = por %p186, %p187
      %p189 = scmp.le.s32.totalorder 1, %s19
      %p190 = scmp.lt.s32.totalorder %s19, 3
      %p191 = pnand %p189, %p190
      %p192 = pneg %p191
      // Predicated region
      $region9: #{tpu_custom_call.1} parent=5 // pred_check
        _
      $region10: #{tpu_custom_call.1} parent=5 // pred_check_branch
        %194 = sbr.rel (%p191) target = $region12
      $region11: #{tpu_custom_call.1} parent=5 // pred_region
        %s195 = ssub.s32 %s19, 1
        // Predicated region
        $region13: #{tpu_custom_call.1} parent=11 // pred_check
          %p196 = pneg %p66
        $region14: #{tpu_custom_call.1} parent=11 // pred_check_branch
          %198 = sbr.rel (%p196) target = $region16
        $region15: #{tpu_custom_call.1} parent=11 // pred_region
          _
        $region16: #{tpu_custom_call.1} parent=11 // pred_fallthru
          _
        // Predicated region
        $region17: #{tpu_custom_call.1} parent=11 // pred_check
          %p199 = pneg %p87
        $region18: #{tpu_custom_call.1} parent=11 // pred_check_branch
          %201 = sbr.rel (%p199) target = $region20
        $region19: #{tpu_custom_call.1} parent=11 // pred_region
          _
        $region20: #{tpu_custom_call.1} parent=11 // pred_fallthru
          _
        // Predicated region
        $region21: #{tpu_custom_call.1} parent=11 // pred_check
          %p202 = pneg %p108
        $region22: #{tpu_custom_call.1} parent=11 // pred_check_branch
          %204 = sbr.rel (%p202) target = $region24
        $region23: #{tpu_custom_call.1} parent=11 // pred_region
          _
        $region24: #{tpu_custom_call.1} parent=11 // pred_fallthru
          _
        // Predicated region
        $region25: #{tpu_custom_call.1} parent=11 // pred_check
          %p205 = pneg %p129
        $region26: #{tpu_custom_call.1} parent=11 // pred_check_branch
          %207 = sbr.rel (%p205) target = $region28
        $region27: #{tpu_custom_call.1} parent=11 // pred_region
          _
        $region28: #{tpu_custom_call.1} parent=11 // pred_fallthru
          _
      $region12: #{tpu_custom_call.1} parent=5 // pred_fallthru
        _
      %p208 = scmp.lt.s32.totalorder %s19, 2
      // Predicated region
      $region29: #{tpu_custom_call.1} parent=5 // pred_check
        %p209 = pneg %p208
      $region30: #{tpu_custom_call.1} parent=5 // pred_check_branch
        %211 = sbr.rel (%p209) target = $region32
      $region31: #{tpu_custom_call.1} parent=5 // pred_region
        // Predicated region
        $region33: #{tpu_custom_call.1} parent=31 // pred_check
          %p212 = pneg %p39
        $region34: #{tpu_custom_call.1} parent=31 // pred_check_branch
          %214 = sbr.rel (%p212) target = $region36
        $region35: #{tpu_custom_call.1} parent=31 // pred_region
          %p215 = scmp.lt.s32.totalorder %s19, 1
          %s216 = scalar_select %p215, %s19, 1
          %s217 = smul.addr %s216, 8
          %s218 = scalar_lea.vmem %s0, %s217
        $region36: #{tpu_custom_call.1} parent=31 // pred_fallthru
          _
      $region32: #{tpu_custom_call.1} parent=5 // pred_fallthru
        _
      %p219 = scmp.le.s32.totalorder 1, %s19
      %p220 = scmp.lt.s32.totalorder %s19, 3
      %p221 = pnand %p219, %p220
      %p222 = pneg %p221
      // Predicated region
      $region37: #{tpu_custom_call.1} parent=5 // pred_check
        _
      $region38: #{tpu_custom_call.1} parent=5 // pred_check_branch
        %224 = sbr.rel (%p221) target = $region40
      $region39: #{tpu_custom_call.1} parent=5 // pred_region
        %s225 = ssub.s32 %s19, 1
        %p226 = scmp.lt.s32.totalorder %s24, 1
        %s227 = scalar_select %p226, %s24, 1
        %s228 = smul.addr %s227, 8
        %s229 = scalar_lea.vmem %s0, %s228
        %p230 = pneg %p45
        %p231 = pneg %p42
        %p232 = pneg %p66
        %p233 = pneg %p63
        %p234 = pneg %p87
        %p235 = pneg %p84
        %p236 = pneg %p108
        %p237 = pneg %p105
        %p238 = pneg %p129
        %p239 = pneg %p126
        %p240 = pneg %p155
        %p241 = pneg %p152
        %s242 = sand.u32 %s142, 1
        %s243 = scalar_lea.sflag [#allocation3], %s242
        %s244 = sand.u32 %s142, 1
        %s245 = smul.addr %s244, 8
        %s246 = scalar_lea.vmem [#allocation2], %s245
        %p247 = pneg %p181
        %p248 = pneg %p178
        %s249 = sand.u32 %s168, 1
        %s250 = scalar_lea.sflag [#allocation5], %s249
        %s251 = sand.u32 %s168, 1
        %s252 = smul.addr %s251, 8
        %s253 = scalar_lea.vmem [#allocation4], %s252
        %p254 = scmp.lt.s32.totalorder %s24, 1
        %s255 = scalar_select %p254, %s24, 1
        %s256 = smul.addr %s255, 8
        %s257 = scalar_lea.vmem %s0, %s256
        %v258 = vld [vmem:[%s257] sm:$0xff]
        %v259 = vld [vmem:[%s1] sm:$0xff]
        %v260 = vld [vmem:[%s1 + $0x8] sm:$0xff]
        %v261 = vld [vmem:[%s1 + $0x10] sm:$0xff]
        %v262 = vld [vmem:[%s1 + $0x18] sm:$0xff]
        %v263 = vld [vmem:[%s1 + $0x20] sm:$0xff]
        %v264 = vld [vmem:[%s1 + $0x28] sm:$0xff]
        %v265 = vld [vmem:[%s1 + $0x30] sm:$0xff]
        %v266 = vld [vmem:[%s1 + $0x38] sm:$0xff]
        %v267 = vld [vmem:[%s1 + $0x40] sm:$0xff]
        %v268 = vld [vmem:[%s1 + $0x48] sm:$0xff]
        %v269 = vld [vmem:[%s1 + $0x50] sm:$0xff]
        %v270 = vld [vmem:[%s1 + $0x58] sm:$0xff]
        %v271 = vld [vmem:[%s1 + $0x60] sm:$0xf]
        %v272 = vld [vmem:[%s2] sm:$0x1]
        %v274 = vlaneseq
        %v275 = vshrl.u32 %v274, 7
        %v276 = vsub.s32 0, %v275
        %v277 = vrot.slane %v272, %v276
        %vm279 = vcmask 818176
        %v281 = vsel %vm279, %v258, 0
        %vm283 = vcmask 1043456
        %v285 = vsel %vm283, %v271, 0
        %287 = vmatprep.subr.mxu0 0.0
        %288 = vmatpush1.msra.mxu0 0.0
        %289 = vmatprep.subr.mxu0 0.0
        %290 = vmatpush1.msra.mxu0 0.0
        %291 = vmatprep.subr.mxu0 0.0
        %292 = vmatpush1.msra.mxu0 0.0
        %293 = vmatprep.subr.mxu0 0.0
        %294 = vmatpush1.msra.mxu0 %v285
        %295 = vmatprep.subr.mxu0 0.0
        %296 = vmatpush1.msra.mxu0 %v270
        %297 = vmatprep.subr.mxu0 0.0
        %298 = vmatpush1.msra.mxu0 %v269
        %299 = vmatprep.subr.mxu0 0.0
        %300 = vmatpush1.msra.mxu0 %v268
        %301 = vmatprep.subr.mxu0 0.0
        %302 = vmatpush1.msra.mxu0 %v267
        %303 = vmatprep.subr.mxu0 0.0
        %304 = vmatpush1.msra.mxu0 %v266
        %305 = vmatprep.subr.mxu0 0.0
        %306 = vmatpush1.msra.mxu0 %v265
        %307 = vmatprep.subr.mxu0 0.0
        %308 = vmatpush1.msra.mxu0 %v264
        %309 = vmatprep.subr.mxu0 0.0
        %310 = vmatpush1.msra.mxu0 %v263
        %311 = vmatprep.subr.mxu0 0.0
        %312 = vmatpush1.msra.mxu0 %v262
        %313 = vmatprep.subr.mxu0 0.0
        %314 = vmatpush1.msra.mxu0 %v261
        %315 = vmatprep.subr.mxu0 0.0
        %316 = vmatpush1.msra.mxu0 %v260
        %317 = vmatprep.subr.mxu0 0.0
        %318 = vmatpush1.msra.mxu0 %v259
        %319 = vmatprep.subr.mxu0 0.0
        %320 = vmatpush2.msra.mxu0 0.0
        %321 = vmatprep.subr.mxu0 0.0
        %322 = vmatpush2.msra.mxu0 0.0
        %323 = vmatprep.subr.mxu0 0.0
        %324 = vmatpush2.msra.mxu0 0.0
        %325 = vmatprep.subr.mxu0 0.0
        %326 = vmatpush2.msra.mxu0 0.0
        %327 = vmatprep.subr.mxu0 0.0
        %328 = vmatpush2.msra.mxu0 0.0
        %329 = vmatprep.subr.mxu0 0.0
        %330 = vmatpush2.msra.mxu0 0.0
        %331 = vmatprep.subr.mxu0 0.0
        %332 = vmatpush2.msra.mxu0 0.0
        %333 = vmatprep.subr.mxu0 0.0
        %334 = vmatpush2.msra.mxu0 0.0
        %335 = vmatprep.subr.mxu0 0.0
        %336 = vmatpush2.msra.mxu0 0.0
        %337 = vmatprep.subr.mxu0 0.0
        %338 = vmatpush2.msra.mxu0 0.0
        %339 = vmatprep.subr.mxu0 0.0
        %340 = vmatpush2.msra.mxu0 0.0
        %341 = vmatprep.subr.mxu0 0.0
        %342 = vmatpush2.msra.mxu0 0.0
        %343 = vmatprep.subr.mxu0 0.0
        %344 = vmatpush2.msra.mxu0 0.0
        %345 = vmatprep.subr.mxu0 0.0
        %346 = vmatpush2.msra.mxu0 0.0
        %347 = vmatprep.subr.mxu0 0.0
        %348 = vmatpush2.msra.mxu0 0.0
        %349 = vmatprep.subr.mxu0 0.0
        %350 = vmatpush2.msra.mxu0 0.0
        %351 = vmatprep.mubr.f32.mxu0 0.0
        %352 = vmatmul.mubr.f32.gmra.mxu0 %v281
        %v353 = vpop.f32.mrf.mxu0
        %v354 = vadd.f32 %v277, %v353
        %v355 = vpop.f32.mrf.mxu0
        %356 = vdwg.mxu0
        %v357 = vmax.f32 %v354, 0.0
        %vm358 = vcmask 162816
        %359 = vst.msk [vmem:[%s246] sm:$0xff] %vm358, %v357
        %v360 = vld [vmem:[%s3] sm:$0xff]
        %v361 = vld [vmem:[%s3 + $0x8] sm:$0xff]
        %v362 = vld [vmem:[%s3 + $0x10] sm:$0xf]
        %v363 = vld [vmem:[%s4] sm:$0x1]
        %v365 = vlaneseq
        %v366 = vshrl.u32 %v365, 7
        %v367 = vsub.s32 0, %v366
        %v368 = vrot.slane %v363, %v367
        %v371 = vsel %vm358, %v357, 0
        %v374 = vsel %vm283, %v362, 0
        %376 = vmatprep.subr.mxu0 0.0
        %377 = vmatpush1.msra.mxu0 0.0
        %378 = vmatprep.subr.mxu0 0.0
        %379 = vmatpush1.msra.mxu0 0.0
        %380 = vmatprep.subr.mxu0 0.0
        %381 = vmatpush1.msra.mxu0 0.0
        %382 = vmatprep.subr.mxu0 0.0
        %383 = vmatpush1.msra.mxu0 0.0
        %384 = vmatprep.subr.mxu0 0.0
        %385 = vmatpush1.msra.mxu0 0.0
        %386 = vmatprep.subr.mxu0 0.0
        %387 = vmatpush1.msra.mxu0 0.0
        %388 = vmatprep.subr.mxu0 0.0
        %389 = vmatpush1.msra.mxu0 0.0
        %390 = vmatprep.subr.mxu0 0.0
        %391 = vmatpush1.msra.mxu0 0.0
        %392 = vmatprep.subr.mxu0 0.0
        %393 = vmatpush1.msra.mxu0 0.0
        %394 = vmatprep.subr.mxu0 0.0
        %395 = vmatpush1.msra.mxu0 0.0
        %396 = vmatprep.subr.mxu0 0.0
        %397 = vmatpush1.msra.mxu0 0.0
        %398 = vmatprep.subr.mxu0 0.0
        %399 = vmatpush1.msra.mxu0 0.0
        %400 = vmatprep.subr.mxu0 0.0
        %401 = vmatpush1.msra.mxu0 0.0
        %402 = vmatprep.subr.mxu0 0.0
        %403 = vmatpush1.msra.mxu0 %v374
        %404 = vmatprep.subr.mxu0 0.0
        %405 = vmatpush1.msra.mxu0 %v361
        %406 = vmatprep.subr.mxu0 0.0
        %407 = vmatpush1.msra.mxu0 %v360
        %408 = vmatprep.subr.mxu0 0.0
        %409 = vmatpush2.msra.mxu0 0.0
        %410 = vmatprep.subr.mxu0 0.0
        %411 = vmatpush2.msra.mxu0 0.0
        %412 = vmatprep.subr.mxu0 0.0
        %413 = vmatpush2.msra.mxu0 0.0
        %414 = vmatprep.subr.mxu0 0.0
        %415 = vmatpush2.msra.mxu0 0.0
        %416 = vmatprep.subr.mxu0 0.0
        %417 = vmatpush2.msra.mxu0 0.0
        %418 = vmatprep.subr.mxu0 0.0
        %419 = vmatpush2.msra.mxu0 0.0
        %420 = vmatprep.subr.mxu0 0.0
        %421 = vmatpush2.msra.mxu0 0.0
        %422 = vmatprep.subr.mxu0 0.0
        %423 = vmatpush2.msra.mxu0 0.0
        %424 = vmatprep.subr.mxu0 0.0
        %425 = vmatpush2.msra.mxu0 0.0
        %426 = vmatprep.subr.mxu0 0.0
        %427 = vmatpush2.msra.mxu0 0.0
        %428 = vmatprep.subr.mxu0 0.0
        %429 = vmatpush2.msra.mxu0 0.0
        %430 = vmatprep.subr.mxu0 0.0
        %431 = vmatpush2.msra.mxu0 0.0
        %432 = vmatprep.subr.mxu0 0.0
        %433 = vmatpush2.msra.mxu0 0.0
        %434 = vmatprep.subr.mxu0 0.0
        %435 = vmatpush2.msra.mxu0 0.0
        %436 = vmatprep.subr.mxu0 0.0
        %437 = vmatpush2.msra.mxu0 0.0
        %438 = vmatprep.subr.mxu0 0.0
        %439 = vmatpush2.msra.mxu0 0.0
        %440 = vmatprep.mubr.f32.mxu0 0.0
        %441 = vmatmul.mubr.f32.gmra.mxu0 %v371
        %v442 = vpop.f32.mrf.mxu0
        %v443 = vadd.f32 %v368, %v442
        %v444 = vpop.f32.mrf.mxu0
        %445 = vdwg.mxu0
        %v446 = vxor.u32 %v443, 2147483648
        %v447 = vmul.f32 %v446, 1.442695
        %v448 = vpow.pop %v447
        %v449 = vadd.f32 %v448, 1.0
        %v450 = vrcp.pop %v449
        %v451 = vmul.f32 1.0, %v450
        %452 = vst.msk [vmem:[%s253] sm:$0xff] %vm279, %v451
        %s453 = sand.u32 %s142, 1
        %s454 = scalar_lea.sflag [#allocation3], %s453
        %s455 = sand.u32 %s142, 1
        %s456 = smul.addr %s455, 8
        %s457 = scalar_lea.vmem [#allocation2], %s456
        %s458 = sand.u32 %s168, 1
        %s459 = scalar_lea.sflag [#allocation5], %s458
        %s460 = sand.u32 %s168, 1
        %s461 = smul.addr %s460, 8
        %s462 = scalar_lea.vmem [#allocation4], %s461
        // Predicated region
        $region41: #{tpu_custom_call.1} parent=39 // pred_check
          %p463 = pneg %p152
        $region42: #{tpu_custom_call.1} parent=39 // pred_check_branch
          %465 = sbr.rel (%p463) target = $region44
        $region43: #{tpu_custom_call.1} parent=39 // pred_region
          %s467 = ssub.s32 128, 128
          %468 = vsyncadd %s454, %s467
          %s469 = smul.addr %s24, 128
          %s470 = scalar_lea.hbm %s5, %s469
          %s472 = sshll.u32 %s457, 4
          %s473 = int_to_ptr.vmem [resolvable:$true] %s472
          %475 = dma.vmem_to_hbm [thread:$0]  %s473, 128, %s470, %s454
        $region44: #{tpu_custom_call.1} parent=39 // pred_fallthru
          _
        // Predicated region
        $region45: #{tpu_custom_call.1} parent=39 // pred_check
          %p476 = pneg %p178
        $region46: #{tpu_custom_call.1} parent=39 // pred_check_branch
          %478 = sbr.rel (%p476) target = $region48
        $region47: #{tpu_custom_call.1} parent=39 // pred_region
          %s480 = ssub.s32 128, 128
          %481 = vsyncadd %s459, %s480
          %s482 = smul.addr %s24, 128
          %s483 = scalar_lea.hbm %s6, %s482
          %s485 = sshll.u32 %s462, 4
          %s486 = int_to_ptr.vmem [resolvable:$true] %s485
          %488 = dma.vmem_to_hbm [thread:$0]  %s486, 128, %s483, %s459
        $region48: #{tpu_custom_call.1} parent=39 // pred_fallthru
          _
      $region40: #{tpu_custom_call.1} parent=5 // pred_fallthru
        _
      %p489 = scmp.le.s32.totalorder 2, %s19
      // Predicated region
      $region49: #{tpu_custom_call.1} parent=5 // pred_check
        %p490 = pneg %p489
      $region50: #{tpu_custom_call.1} parent=5 // pred_check_branch
        %492 = sbr.rel (%p490) target = $region52
      $region51: #{tpu_custom_call.1} parent=5 // pred_region
        %s493 = ssub.s32 %s19, 2
        // Predicated region
        $region53: #{tpu_custom_call.1} parent=51 // pred_check
          %p494 = pneg %p158
        $region54: #{tpu_custom_call.1} parent=51 // pred_check_branch
          %496 = sbr.rel (%p494) target = $region56
        $region55: #{tpu_custom_call.1} parent=51 // pred_region
          %s497 = sand.u32 %s143, 1
          %s498 = scalar_lea.sflag [#allocation3], %s497
          %s499 = sand.u32 %s143, 1
          %s500 = smul.addr %s499, 8
          %s501 = scalar_lea.vmem [#allocation2], %s500
          %502 = dma.done %s498, 128
        $region56: #{tpu_custom_call.1} parent=51 // pred_fallthru
          _
        // Predicated region
        $region57: #{tpu_custom_call.1} parent=51 // pred_check
          %p503 = pneg %p184
        $region58: #{tpu_custom_call.1} parent=51 // pred_check_branch
          %505 = sbr.rel (%p503) target = $region60
        $region59: #{tpu_custom_call.1} parent=51 // pred_region
          %s506 = sand.u32 %s169, 1
          %s507 = scalar_lea.sflag [#allocation5], %s506
          %s508 = sand.u32 %s169, 1
          %s509 = smul.addr %s508, 8
          %s510 = scalar_lea.vmem [#allocation4], %s509
          %511 = dma.done %s507, 128
        $region60: #{tpu_custom_call.1} parent=51 // pred_fallthru
          _
      $region52: #{tpu_custom_call.1} parent=5 // pred_fallthru
        _
    $region6: #{tpu_custom_call.1} parent=1 // loop_footer
      %s23 = sadd.s32 1, %s19
    $region7: #{tpu_custom_call.1} parent=1 // loop_footer_branch
      %18 = sbr.rel target = $region3
    $region8: #{tpu_custom_call.1} parent=1 // loop_exit
      _
    %512 = vsyncpa [#allocation3], 1
    %s513 = scalar_lea.sflag [#allocation3], 1
    %514 = vsyncpa %s513, 1
    %515 = vsyncpa [#allocation5], 1
    %s516 = scalar_lea.sflag [#allocation5], 1
    %517 = vsyncpa %s516, 1

</llo_original>
